<compile_context>
chip_gen: v7x
topology: tpu7x:2x2x1
jax: 0.10.0
libtpu: 0.0.40
codegen_flags: <defaults>
</compile_context>

<pallas_src>
import math

import jax
import jax.numpy as jnp
from jax.experimental import pallas as pl
from jax.experimental.pallas import tpu as pltpu


def _make_attn_kernel(B, Lq, Lk, scale):
    BLq, BLk = B * Lq, B * Lk
    NEG = -1e30  # large-but-finite mask bias (review: avoid finfo.min -> -inf overflow)

    def kernel(n_ref, q_ref, k_ref, v_ref, o_ref):
        # ---- block-diagonal + n-mask additive bias, built in-kernel (VPU filler) ----
        ri = jax.lax.broadcasted_iota(jnp.int32, (BLq, BLk), 0)
        ci = jax.lax.broadcasted_iota(jnp.int32, (BLq, BLk), 1)
        # Batch index of each flattened row / col via compares (no vector int div).
        b_r = jnp.zeros((BLq, BLk), jnp.int32)
        b_c = jnp.zeros((BLq, BLk), jnp.int32)
        for t in range(1, B):
            b_r = b_r + (ri >= t * Lq).astype(jnp.int32)
            b_c = b_c + (ci >= t * Lk).astype(jnp.int32)
        rm = ri - b_r * Lq                      # query index within its batch block
        cm = ci - b_c * Lk                      # key   index within its batch block

        # Forbid cross-batch attention (off-diagonal blocks of the flat scores).
        bias = jnp.where(b_r != b_c, NEG, 0.0).astype(jnp.float32)

        # masked_fill(n == 1, -inf) as an additive bias; n is tiny, so scalar
        # SMEM reads + iota-compare selects are essentially free under MXU slack.
        # TODO(synk): at non-toy Lq*Lk replace this unrolled loop with a tiled,
        # flash-style kernel (KV grid axis + online softmax; 'parallel' batch/query
        # axis so v7x's second TensorCore is used, and re-derive tiles for 64 MiB VMEM).
        for qi in range(Lq):
            row_hit = rm == qi
            for kj in range(Lk):
                hit = jnp.logical_and(row_hit, cm == kj)
                nval = jnp.where(n_ref[qi, kj] == 1.0, NEG, 0.0)   # scalar (SMEM)
                bias = bias + jnp.where(hit, nval, 0.0)

        # ---- scores: single 2-D MXU matmul, contraction over D (no explicit k^T) ----
        qf = q_ref[...] * scale                                     # (B*Lq, D)
        s = jax.lax.dot_general(qf, k_ref[...],
                                dimension_numbers=(((1,), (1,)), ((), ())),
                                preferred_element_type=jnp.float32)  # (B*Lq, B*Lk)
        s = s + bias

        # ---- numerically stable softmax over the flattened key axis ----
        m = jnp.max(s, axis=-1, keepdims=True)
        e = jnp.exp(s - m)                       # masked entries underflow to exactly 0
        denom = jnp.sum(e, axis=-1, keepdims=True)
        w = e * pl.reciprocal(denom, approx=True)                   # EUP slot

        # ---- output: single 2-D MXU matmul, one dense (B*Lq, Dv) slab store ----
        o_ref[...] = jnp.dot(w, v_ref[...],
                             preferred_element_type=jnp.float32).astype(o_ref.dtype)

    return kernel


def attention_pallas(k, v, n, q):
    """k: (B, Lk, D), v: (B, Lk, Dv), n: (Lq, Lk) float mask (1 => masked), q: (B, Lq, D)."""
    B, Lk, D = k.shape
    _, Lq, _ = q.shape
    Dv = v.shape[-1]
    scale = 1.0 / math.sqrt(q.shape[-1])

    # Layout plumbing only (no compute hoisted out of the kernel): flatten batch
    # into the row dim so the kernel runs two plain 2-D matmuls on dense slabs.
    qf = q.reshape(B * Lq, D)
    kf = k.reshape(B * Lk, D)
    vf = v.reshape(B * Lk, Dv)

    out_flat = pl.pallas_call(
        _make_attn_kernel(B, Lq, Lk, scale),
        out_shape=jax.ShapeDtypeStruct((B * Lq, Dv), jnp.float32),
        in_specs=[
            pl.BlockSpec(memory_space=pltpu.MemorySpace.SMEM),  # n: tiny, scalar-read
            pl.BlockSpec(memory_space=pltpu.MemorySpace.VMEM),  # q (flattened)
            pl.BlockSpec(memory_space=pltpu.MemorySpace.VMEM),  # k (flattened)
            pl.BlockSpec(memory_space=pltpu.MemorySpace.VMEM),  # v (flattened)
        ],
        out_specs=pl.BlockSpec(memory_space=pltpu.MemorySpace.VMEM),
        # grid-less: single invocation, no grid-loop / pipelining machinery.
    )(n, qf, kf, vf)

    return out_flat.reshape(B, Lq, Dv)


def reference(k, v, n, q):
    s = jnp.einsum("bqd,bkd->bqk", q, k) / math.sqrt(q.shape[-1])
    s = jnp.where((n == 1.0)[None, :, :], -jnp.inf, s)
    w = jax.nn.softmax(s, axis=-1)
    return jnp.einsum("bqk,bkv->bqv", w, v)


if __name__ == "__main__":
    # Shapes implied by the module's globals: k (3,4,5), v (3,4,10),
    # qk (3,3,4) from q (3,3,5), n is (3,4) mask, output (3,3,10).
    B, Lq, Lk, D, Dv = 3, 3, 4, 5, 10

    key = jax.random.PRNGKey(0)
    kq, kk, kv, kw1, kw2 = jax.random.split(key, 5)

    q = jax.random.normal(kq, (B, Lq, D), dtype=jnp.float32)
    k = jax.random.normal(kk, (B, Lk, D), dtype=jnp.float32)
    v = jax.random.normal(kv, (B, Lk, Dv), dtype=jnp.float32)

    # Mask: 1 => masked out. Keep at least one unmasked key per query row so the
    # softmax is finite (torch.ones(3,4) would give all-NaN rows in PyTorch).
    n = (jnp.arange(Lk)[None, :] < jnp.arange(Lq)[:, None]).astype(jnp.float32)  # (Lq, Lk)

    # Deterministic init of the module's (unused-in-forward) Linear layers.
    linear1_w = jax.random.normal(kw1, (1, 15), dtype=jnp.float32) * (1.0 / math.sqrt(15))
    linear1_b = jnp.zeros((1,), dtype=jnp.float32)
    linear2_w = jax.random.normal(kw2, (5, 15), dtype=jnp.float32) * (1.0 / math.sqrt(15))
    linear2_b = jnp.zeros((5,), dtype=jnp.float32)
    # TODO(synk): linear1/linear2 are defined in __init__ but never used in forward.

    out = attention_pallas(k, v, n, q)
    out = jax.block_until_ready(out)

    ref = reference(k, v, n, q)
    assert out.shape == (B, Lq, Dv), out.shape
    # Tolerance loosened slightly for the EUP approximate reciprocal.
    assert jnp.allclose(out, ref, atol=2e-3, rtol=2e-3), (
        "mismatch", float(jnp.max(jnp.abs(out - ref))))

    print("KERNEL_OK")
</pallas_src>

<mosaic_0001>
module attributes {stable_mosaic.version = 11 : i64} {
  func.func @kernel(%arg0: memref<3x4xf32, #tpu.memory_space<smem>>, %arg1: memref<9x5xf32, #tpu.memory_space<vmem>>, %arg2: memref<12x5xf32, #tpu.memory_space<vmem>>, %arg3: memref<12x10xf32, #tpu.memory_space<vmem>>, %arg4: memref<9x10xf32, #tpu.memory_space<vmem>>) attributes {dimension_semantics = [], scalar_prefetch = 0 : i64, scratch_operands = 0 : i64, tpu.core_type = #tpu.core_type<tc>} {
    %0 = tpu.iota {dimensions = array<i32: 0>} : vector<9x12xi32>
    %1 = tpu.iota {dimensions = array<i32: 1>} : vector<9x12xi32>
    %c0_i32 = arith.constant 0 : i32
    %2 = vector.broadcast %c0_i32 : i32 to vector<9x12xi32>
    %c0_i32_0 = arith.constant 0 : i32
    %3 = vector.broadcast %c0_i32_0 : i32 to vector<9x12xi32>
    %c3_i32 = arith.constant 3 : i32
    %4 = vector.broadcast %c3_i32 : i32 to vector<9x12xi32>
    %5 = arith.cmpi sge, %0, %4 : vector<9x12xi32>
    %6 = arith.extui %5 : vector<9x12xi1> to vector<9x12xi32>
    %7 = arith.addi %2, %6 : vector<9x12xi32>
    %c4_i32 = arith.constant 4 : i32
    %8 = vector.broadcast %c4_i32 : i32 to vector<9x12xi32>
    %9 = arith.cmpi sge, %1, %8 : vector<9x12xi32>
    %10 = arith.extui %9 : vector<9x12xi1> to vector<9x12xi32>
    %11 = arith.addi %3, %10 : vector<9x12xi32>
    %c6_i32 = arith.constant 6 : i32
    %12 = vector.broadcast %c6_i32 : i32 to vector<9x12xi32>
    %13 = arith.cmpi sge, %0, %12 : vector<9x12xi32>
    %14 = arith.extui %13 : vector<9x12xi1> to vector<9x12xi32>
    %15 = arith.addi %7, %14 : vector<9x12xi32>
    %c8_i32 = arith.constant 8 : i32
    %16 = vector.broadcast %c8_i32 : i32 to vector<9x12xi32>
    %17 = arith.cmpi sge, %1, %16 : vector<9x12xi32>
    %18 = arith.extui %17 : vector<9x12xi1> to vector<9x12xi32>
    %19 = arith.addi %11, %18 : vector<9x12xi32>
    %c3_i32_1 = arith.constant 3 : i32
    %20 = vector.broadcast %c3_i32_1 : i32 to vector<9x12xi32>
    %21 = arith.muli %15, %20 : vector<9x12xi32>
    %22 = arith.subi %0, %21 : vector<9x12xi32>
    %c4_i32_2 = arith.constant 4 : i32
    %23 = vector.broadcast %c4_i32_2 : i32 to vector<9x12xi32>
    %24 = arith.muli %19, %23 : vector<9x12xi32>
    %25 = arith.subi %1, %24 : vector<9x12xi32>
    %26 = arith.cmpi ne, %15, %19 : vector<9x12xi32>
    %cst = arith.constant -1.000000e+30 : f32
    %cst_3 = arith.constant 0.000000e+00 : f32
    %27 = vector.broadcast %cst : f32 to vector<9x12xf32>
    %28 = vector.broadcast %cst_3 : f32 to vector<9x12xf32>
    %29 = arith.select %26, %27, %28 : vector<9x12xi1>, vector<9x12xf32>
    %c0_i32_4 = arith.constant 0 : i32
    %30 = vector.broadcast %c0_i32_4 : i32 to vector<9x12xi32>
    %31 = arith.cmpi eq, %22, %30 : vector<9x12xi32>
    %c0_i32_5 = arith.constant 0 : i32
    %32 = vector.broadcast %c0_i32_5 : i32 to vector<9x12xi32>
    %33 = arith.cmpi eq, %25, %32 : vector<9x12xi32>
    %34 = arith.andi %31, %33 : vector<9x12xi1>
    %c0 = arith.constant 0 : index
    %c0_6 = arith.constant 0 : index
    %35 = memref.load %arg0[%c0, %c0_6] : memref<3x4xf32, #tpu.memory_space<smem>>
    %cst_7 = arith.constant 1.000000e+00 : f32
    %36 = arith.cmpf oeq, %35, %cst_7 : f32
    %cst_8 = arith.constant -1.000000e+30 : f32
    %cst_9 = arith.constant 0.000000e+00 : f32
    %37 = arith.select %36, %cst_8, %cst_9 : f32
    %cst_10 = arith.constant 0.000000e+00 : f32
    %38 = vector.broadcast %37 : f32 to vector<9x12xf32>
    %39 = vector.broadcast %cst_10 : f32 to vector<9x12xf32>
    %40 = arith.select %34, %38, %39 : vector<9x12xi1>, vector<9x12xf32>
    %41 = arith.addf %29, %40 : vector<9x12xf32>
    %c1_i32 = arith.constant 1 : i32
    %42 = vector.broadcast %c1_i32 : i32 to vector<9x12xi32>
    %43 = arith.cmpi eq, %25, %42 : vector<9x12xi32>
    %44 = arith.andi %31, %43 : vector<9x12xi1>
    %c0_11 = arith.constant 0 : index
    %c1 = arith.constant 1 : index
    %45 = memref.load %arg0[%c0_11, %c1] : memref<3x4xf32, #tpu.memory_space<smem>>
    %cst_12 = arith.constant 1.000000e+00 : f32
    %46 = arith.cmpf oeq, %45, %cst_12 : f32
    %cst_13 = arith.constant -1.000000e+30 : f32
    %cst_14 = arith.constant 0.000000e+00 : f32
    %47 = arith.select %46, %cst_13, %cst_14 : f32
    %cst_15 = arith.constant 0.000000e+00 : f32
    %48 = vector.broadcast %47 : f32 to vector<9x12xf32>
    %49 = vector.broadcast %cst_15 : f32 to vector<9x12xf32>
    %50 = arith.select %44, %48, %49 : vector<9x12xi1>, vector<9x12xf32>
    %51 = arith.addf %41, %50 : vector<9x12xf32>
    %c2_i32 = arith.constant 2 : i32
    %52 = vector.broadcast %c2_i32 : i32 to vector<9x12xi32>
    %53 = arith.cmpi eq, %25, %52 : vector<9x12xi32>
    %54 = arith.andi %31, %53 : vector<9x12xi1>
    %c0_16 = arith.constant 0 : index
    %c2 = arith.constant 2 : index
    %55 = memref.load %arg0[%c0_16, %c2] : memref<3x4xf32, #tpu.memory_space<smem>>
    %cst_17 = arith.constant 1.000000e+00 : f32
    %56 = arith.cmpf oeq, %55, %cst_17 : f32
    %cst_18 = arith.constant -1.000000e+30 : f32
    %cst_19 = arith.constant 0.000000e+00 : f32
    %57 = arith.select %56, %cst_18, %cst_19 : f32
    %cst_20 = arith.constant 0.000000e+00 : f32
    %58 = vector.broadcast %57 : f32 to vector<9x12xf32>
    %59 = vector.broadcast %cst_20 : f32 to vector<9x12xf32>
    %60 = arith.select %54, %58, %59 : vector<9x12xi1>, vector<9x12xf32>
    %61 = arith.addf %51, %60 : vector<9x12xf32>
    %c3_i32_21 = arith.constant 3 : i32
    %62 = vector.broadcast %c3_i32_21 : i32 to vector<9x12xi32>
    %63 = arith.cmpi eq, %25, %62 : vector<9x12xi32>
    %64 = arith.andi %31, %63 : vector<9x12xi1>
    %c0_22 = arith.constant 0 : index
    %c3 = arith.constant 3 : index
    %65 = memref.load %arg0[%c0_22, %c3] : memref<3x4xf32, #tpu.memory_space<smem>>
    %cst_23 = arith.constant 1.000000e+00 : f32
    %66 = arith.cmpf oeq, %65, %cst_23 : f32
    %cst_24 = arith.constant -1.000000e+30 : f32
    %cst_25 = arith.constant 0.000000e+00 : f32
    %67 = arith.select %66, %cst_24, %cst_25 : f32
    %cst_26 = arith.constant 0.000000e+00 : f32
    %68 = vector.broadcast %67 : f32 to vector<9x12xf32>
    %69 = vector.broadcast %cst_26 : f32 to vector<9x12xf32>
    %70 = arith.select %64, %68, %69 : vector<9x12xi1>, vector<9x12xf32>
    %71 = arith.addf %61, %70 : vector<9x12xf32>
    %c1_i32_27 = arith.constant 1 : i32
    %72 = vector.broadcast %c1_i32_27 : i32 to vector<9x12xi32>
    %73 = arith.cmpi eq, %22, %72 : vector<9x12xi32>
    %c0_i32_28 = arith.constant 0 : i32
    %74 = vector.broadcast %c0_i32_28 : i32 to vector<9x12xi32>
    %75 = arith.cmpi eq, %25, %74 : vector<9x12xi32>
    %76 = arith.andi %73, %75 : vector<9x12xi1>
    %c1_29 = arith.constant 1 : index
    %c0_30 = arith.constant 0 : index
    %77 = memref.load %arg0[%c1_29, %c0_30] : memref<3x4xf32, #tpu.memory_space<smem>>
    %cst_31 = arith.constant 1.000000e+00 : f32
    %78 = arith.cmpf oeq, %77, %cst_31 : f32
    %cst_32 = arith.constant -1.000000e+30 : f32
    %cst_33 = arith.constant 0.000000e+00 : f32
    %79 = arith.select %78, %cst_32, %cst_33 : f32
    %cst_34 = arith.constant 0.000000e+00 : f32
    %80 = vector.broadcast %79 : f32 to vector<9x12xf32>
    %81 = vector.broadcast %cst_34 : f32 to vector<9x12xf32>
    %82 = arith.select %76, %80, %81 : vector<9x12xi1>, vector<9x12xf32>
    %83 = arith.addf %71, %82 : vector<9x12xf32>
    %c1_i32_35 = arith.constant 1 : i32
    %84 = vector.broadcast %c1_i32_35 : i32 to vector<9x12xi32>
    %85 = arith.cmpi eq, %25, %84 : vector<9x12xi32>
    %86 = arith.andi %73, %85 : vector<9x12xi1>
    %c1_36 = arith.constant 1 : index
    %c1_37 = arith.constant 1 : index
    %87 = memref.load %arg0[%c1_36, %c1_37] : memref<3x4xf32, #tpu.memory_space<smem>>
    %cst_38 = arith.constant 1.000000e+00 : f32
    %88 = arith.cmpf oeq, %87, %cst_38 : f32
    %cst_39 = arith.constant -1.000000e+30 : f32
    %cst_40 = arith.constant 0.000000e+00 : f32
    %89 = arith.select %88, %cst_39, %cst_40 : f32
    %cst_41 = arith.constant 0.000000e+00 : f32
    %90 = vector.broadcast %89 : f32 to vector<9x12xf32>
    %91 = vector.broadcast %cst_41 : f32 to vector<9x12xf32>
    %92 = arith.select %86, %90, %91 : vector<9x12xi1>, vector<9x12xf32>
    %93 = arith.addf %83, %92 : vector<9x12xf32>
    %c2_i32_42 = arith.constant 2 : i32
    %94 = vector.broadcast %c2_i32_42 : i32 to vector<9x12xi32>
    %95 = arith.cmpi eq, %25, %94 : vector<9x12xi32>
    %96 = arith.andi %73, %95 : vector<9x12xi1>
    %c1_43 = arith.constant 1 : index
    %c2_44 = arith.constant 2 : index
    %97 = memref.load %arg0[%c1_43, %c2_44] : memref<3x4xf32, #tpu.memory_space<smem>>
    %cst_45 = arith.constant 1.000000e+00 : f32
    %98 = arith.cmpf oeq, %97, %cst_45 : f32
    %cst_46 = arith.constant -1.000000e+30 : f32
    %cst_47 = arith.constant 0.000000e+00 : f32
    %99 = arith.select %98, %cst_46, %cst_47 : f32
    %cst_48 = arith.constant 0.000000e+00 : f32
    %100 = vector.broadcast %99 : f32 to vector<9x12xf32>
    %101 = vector.broadcast %cst_48 : f32 to vector<9x12xf32>
    %102 = arith.select %96, %100, %101 : vector<9x12xi1>, vector<9x12xf32>
    %103 = arith.addf %93, %102 : vector<9x12xf32>
    %c3_i32_49 = arith.constant 3 : i32
    %104 = vector.broadcast %c3_i32_49 : i32 to vector<9x12xi32>
    %105 = arith.cmpi eq, %25, %104 : vector<9x12xi32>
    %106 = arith.andi %73, %105 : vector<9x12xi1>
    %c1_50 = arith.constant 1 : index
    %c3_51 = arith.constant 3 : index
    %107 = memref.load %arg0[%c1_50, %c3_51] : memref<3x4xf32, #tpu.memory_space<smem>>
    %cst_52 = arith.constant 1.000000e+00 : f32
    %108 = arith.cmpf oeq, %107, %cst_52 : f32
    %cst_53 = arith.constant -1.000000e+30 : f32
    %cst_54 = arith.constant 0.000000e+00 : f32
    %109 = arith.select %108, %cst_53, %cst_54 : f32
    %cst_55 = arith.constant 0.000000e+00 : f32
    %110 = vector.broadcast %109 : f32 to vector<9x12xf32>
    %111 = vector.broadcast %cst_55 : f32 to vector<9x12xf32>
    %112 = arith.select %106, %110, %111 : vector<9x12xi1>, vector<9x12xf32>
    %113 = arith.addf %103, %112 : vector<9x12xf32>
    %c2_i32_56 = arith.constant 2 : i32
    %114 = vector.broadcast %c2_i32_56 : i32 to vector<9x12xi32>
    %115 = arith.cmpi eq, %22, %114 : vector<9x12xi32>
    %c0_i32_57 = arith.constant 0 : i32
    %116 = vector.broadcast %c0_i32_57 : i32 to vector<9x12xi32>
    %117 = arith.cmpi eq, %25, %116 : vector<9x12xi32>
    %118 = arith.andi %115, %117 : vector<9x12xi1>
    %c2_58 = arith.constant 2 : index
    %c0_59 = arith.constant 0 : index
    %119 = memref.load %arg0[%c2_58, %c0_59] : memref<3x4xf32, #tpu.memory_space<smem>>
    %cst_60 = arith.constant 1.000000e+00 : f32
    %120 = arith.cmpf oeq, %119, %cst_60 : f32
    %cst_61 = arith.constant -1.000000e+30 : f32
    %cst_62 = arith.constant 0.000000e+00 : f32
    %121 = arith.select %120, %cst_61, %cst_62 : f32
    %cst_63 = arith.constant 0.000000e+00 : f32
    %122 = vector.broadcast %121 : f32 to vector<9x12xf32>
    %123 = vector.broadcast %cst_63 : f32 to vector<9x12xf32>
    %124 = arith.select %118, %122, %123 : vector<9x12xi1>, vector<9x12xf32>
    %125 = arith.addf %113, %124 : vector<9x12xf32>
    %c1_i32_64 = arith.constant 1 : i32
    %126 = vector.broadcast %c1_i32_64 : i32 to vector<9x12xi32>
    %127 = arith.cmpi eq, %25, %126 : vector<9x12xi32>
    %128 = arith.andi %115, %127 : vector<9x12xi1>
    %c2_65 = arith.constant 2 : index
    %c1_66 = arith.constant 1 : index
    %129 = memref.load %arg0[%c2_65, %c1_66] : memref<3x4xf32, #tpu.memory_space<smem>>
    %cst_67 = arith.constant 1.000000e+00 : f32
    %130 = arith.cmpf oeq, %129, %cst_67 : f32
    %cst_68 = arith.constant -1.000000e+30 : f32
    %cst_69 = arith.constant 0.000000e+00 : f32
    %131 = arith.select %130, %cst_68, %cst_69 : f32
    %cst_70 = arith.constant 0.000000e+00 : f32
    %132 = vector.broadcast %131 : f32 to vector<9x12xf32>
    %133 = vector.broadcast %cst_70 : f32 to vector<9x12xf32>
    %134 = arith.select %128, %132, %133 : vector<9x12xi1>, vector<9x12xf32>
    %135 = arith.addf %125, %134 : vector<9x12xf32>
    %c2_i32_71 = arith.constant 2 : i32
    %136 = vector.broadcast %c2_i32_71 : i32 to vector<9x12xi32>
    %137 = arith.cmpi eq, %25, %136 : vector<9x12xi32>
    %138 = arith.andi %115, %137 : vector<9x12xi1>
    %c2_72 = arith.constant 2 : index
    %c2_73 = arith.constant 2 : index
    %139 = memref.load %arg0[%c2_72, %c2_73] : memref<3x4xf32, #tpu.memory_space<smem>>
    %cst_74 = arith.constant 1.000000e+00 : f32
    %140 = arith.cmpf oeq, %139, %cst_74 : f32
    %cst_75 = arith.constant -1.000000e+30 : f32
    %cst_76 = arith.constant 0.000000e+00 : f32
    %141 = arith.select %140, %cst_75, %cst_76 : f32
    %cst_77 = arith.constant 0.000000e+00 : f32
    %142 = vector.broadcast %141 : f32 to vector<9x12xf32>
    %143 = vector.broadcast %cst_77 : f32 to vector<9x12xf32>
    %144 = arith.select %138, %142, %143 : vector<9x12xi1>, vector<9x12xf32>
    %145 = arith.addf %135, %144 : vector<9x12xf32>
    %c3_i32_78 = arith.constant 3 : i32
    %146 = vector.broadcast %c3_i32_78 : i32 to vector<9x12xi32>
    %147 = arith.cmpi eq, %25, %146 : vector<9x12xi32>
    %148 = arith.andi %115, %147 : vector<9x12xi1>
    %c2_79 = arith.constant 2 : index
    %c3_80 = arith.constant 3 : index
    %149 = memref.load %arg0[%c2_79, %c3_80] : memref<3x4xf32, #tpu.memory_space<smem>>
    %cst_81 = arith.constant 1.000000e+00 : f32
    %150 = arith.cmpf oeq, %149, %cst_81 : f32
    %cst_82 = arith.constant -1.000000e+30 : f32
    %cst_83 = arith.constant 0.000000e+00 : f32
    %151 = arith.select %150, %cst_82, %cst_83 : f32
    %cst_84 = arith.constant 0.000000e+00 : f32
    %152 = vector.broadcast %151 : f32 to vector<9x12xf32>
    %153 = vector.broadcast %cst_84 : f32 to vector<9x12xf32>
    %154 = arith.select %148, %152, %153 : vector<9x12xi1>, vector<9x12xf32>
    %155 = arith.addf %145, %154 : vector<9x12xf32>
    %c0_85 = arith.constant 0 : index
    %c0_86 = arith.constant 0 : index
    %156 = vector.load %arg1[%c0_85, %c0_86] : memref<9x5xf32, #tpu.memory_space<vmem>>, vector<9x5xf32>
    %cst_87 = arith.constant 0.44721359 : f32
    %157 = vector.broadcast %cst_87 : f32 to vector<9x5xf32>
    %158 = arith.mulf %156, %157 : vector<9x5xf32>
    %c0_88 = arith.constant 0 : index
    %c0_89 = arith.constant 0 : index
    %159 = vector.load %arg2[%c0_88, %c0_89] : memref<12x5xf32, #tpu.memory_space<vmem>>, vector<12x5xf32>
    %cst_90 = arith.constant dense<0.000000e+00> : vector<9x12xf32>
    %160 = tpu.matmul %158, %159, %cst_90 {dimension_numbers = #tpu.dot_dimension_numbers<[1], [1], [0], [0], [0, 0, 1, 0], [], []>} : vector<9x5xf32>, vector<12x5xf32>, vector<9x12xf32> -> vector<9x12xf32>
    %161 = arith.addf %160, %155 : vector<9x12xf32>
    %cst_91 = arith.constant dense<0xFF800000> : vector<9xf32>
    %162 = vector.multi_reduction <maximumf>, %161, %cst_91 [1] : vector<9x12xf32> to vector<9xf32>
    %163 = vector.shape_cast %162 : vector<9xf32> to vector<9x1xf32>
    %164 = vector.broadcast %163 : vector<9x1xf32> to vector<9x12xf32>
    %165 = arith.subf %161, %164 : vector<9x12xf32>
    %166 = math.exp %165 : vector<9x12xf32>
    %cst_92 = arith.constant dense<0.000000e+00> : vector<9xf32>
    %167 = vector.multi_reduction <add>, %166, %cst_92 [1] : vector<9x12xf32> to vector<9xf32>
    %168 = vector.shape_cast %167 : vector<9xf32> to vector<9x1xf32>
    %169 = tpu.reciprocal %168 {approx = true} : vector<9x1xf32> -> vector<9x1xf32>
    %170 = vector.broadcast %169 : vector<9x1xf32> to vector<9x12xf32>
    %171 = arith.mulf %166, %170 : vector<9x12xf32>
    %c0_93 = arith.constant 0 : index
    %c0_94 = arith.constant 0 : index
    %172 = vector.load %arg3[%c0_93, %c0_94] : memref<12x10xf32, #tpu.memory_space<vmem>>, vector<12x10xf32>
    %cst_95 = arith.constant dense<0.000000e+00> : vector<9x10xf32>
    %173 = tpu.matmul %171, %172, %cst_95 {dimension_numbers = #tpu.dot_dimension_numbers<[1], [0], [0], [1], [0, 0, 1, 1], [], []>} : vector<9x12xf32>, vector<12x10xf32>, vector<9x10xf32> -> vector<9x10xf32>
    %c0_96 = arith.constant 0 : index
    %c0_97 = arith.constant 0 : index
    %174 = vector.load %arg4[%c0_96, %c0_97] : memref<9x10xf32, #tpu.memory_space<vmem>>, vector<9x10xf32>
    tpu.vector_store %arg4[%c0_96, %c0_97], %173 {strides = array<i32>} : memref<9x10xf32, #tpu.memory_space<vmem>>, vector<9x10xf32>,
    return
  }
}

</mosaic_0001>

<llo_original>
// kernel: tpu_custom_call.1
$region0: #{tpu_custom_call.1}
  #allocation0 [shape = 'u32[]', space=smem, size = 0x4, offset = 0x4, fixed_abs, tag = 'smem constant byte address 0x4 - core index']
  #allocation1 [shape = 'u32[144,128]{1,0:T(1,128)}', space=vmem, size = 0x12000, scoped, tag = 'internal scratch']
  %s0 = inlined_call_operand.vmem [shape: f32[3,4], index: 0, kind: input, shape index: {}]
  %s1 = inlined_call_operand.vmem [shape: f32[9,5], index: 1, kind: input, shape index: {}]
  %s2 = inlined_call_operand.vmem [shape: f32[12,5], index: 2, kind: input, shape index: {}]
  %s3 = inlined_call_operand.vmem [shape: f32[12,10], index: 3, kind: input, shape index: {}]
  %s4 = inlined_call_operand.hbm [shape: f32[9,10], index: 4, kind: output, shape index: {}]
  %s5 = sld [smem:[#allocation0]]
  $region30: #{tpu_custom_call.1} parent=0
    _
  %s7 = ssub.s32 1, %s5
  %s8 = scalar_select 0, %s7, %s5
  $region1: #{tpu_custom_call.1} parent=0
    #allocation2 [shape = 'u8[2048]{0}', space=smem, size = 0x800, scoped, tag = 'input window, operand 0, single buffered']
    #allocation3 [shape = 's32[1]{0}', space=sflag, size = 0x4, scoped, tag = 'scoped memory for tpu_custom_call.1']
    #allocation4 [shape = 's32[1]{0}', space=sflag, size = 0x4, scoped, tag = 'scoped memory for tpu_custom_call.1']
    #allocation5 [shape = 'u8[8192]{0}', space=vmem, size = 0x2000, scoped, tag = 'output window, operand 0, single buffered']
    %9 = vsyncpa [#allocation4], 0
    %10 = vsyncpa [#allocation3], 0
    // Predicated region
    $region2: #{tpu_custom_call.1} parent=1 // pred_check
      _
    $region3: #{tpu_custom_call.1} parent=1 // pred_check_branch
      %12 = sbr.rel (0) target = $region5
    $region4: #{tpu_custom_call.1} parent=1 // pred_region
      %s14 = ssub.s32 64, 64
      %15 = vsyncadd [#allocation4], %s14
      %s17 = sshll.u32 %s0, 4
      %s18 = int_to_ptr.vmem [resolvable:$true] %s17
      %20 = dma.vmem_to_smem %s18, 64, [#allocation2], [#allocation4]
    $region5: #{tpu_custom_call.1} parent=1 // pred_fallthru
      _
    // Predicated region
    $region6: #{tpu_custom_call.1} parent=1 // pred_check
      _
    $region7: #{tpu_custom_call.1} parent=1 // pred_check_branch
      %22 = sbr.rel (0) target = $region9
    $region8: #{tpu_custom_call.1} parent=1 // pred_region
      _
    $region9: #{tpu_custom_call.1} parent=1 // pred_fallthru
      _
    // Predicated region
    $region10: #{tpu_custom_call.1} parent=1 // pred_check
      _
    $region11: #{tpu_custom_call.1} parent=1 // pred_check_branch
      %24 = sbr.rel (0) target = $region13
    $region12: #{tpu_custom_call.1} parent=1 // pred_region
      _
    $region13: #{tpu_custom_call.1} parent=1 // pred_fallthru
      _
    // Predicated region
    $region14: #{tpu_custom_call.1} parent=1 // pred_check
      _
    $region15: #{tpu_custom_call.1} parent=1 // pred_check_branch
      %26 = sbr.rel (0) target = $region17
    $region16: #{tpu_custom_call.1} parent=1 // pred_region
      _
    $region17: #{tpu_custom_call.1} parent=1 // pred_fallthru
      _
    // Predicated region
    $region18: #{tpu_custom_call.1} parent=1 // pred_check
      _
    $region19: #{tpu_custom_call.1} parent=1 // pred_check_branch
      %28 = sbr.rel (0) target = $region21
    $region20: #{tpu_custom_call.1} parent=1 // pred_region
      %29 = dma.done [#allocation4], 64
    $region21: #{tpu_custom_call.1} parent=1 // pred_fallthru
      _
    %30 = sfence
    %v31 = vlaneseq
    %v32 = vshrl.u32 %v31, 7
    %v33 = vadd.s32 %v32, 8
    %v34 = vlaneseq
    %v35 = vand.u32 %v34, 127
    %vm36 = vcmp.ge.s32.totalorder %v32, 3
    %vm37 = vcmp.ge.s32.totalorder %v33, 3
    %v38 = vsel %vm36, 1, 0
    %v39 = vsel %vm37, 1, 0
    %vm40 = vcmp.ge.s32.totalorder %v35, 4
    %v41 = vsel %vm40, 1, 0
    %vm42 = vcmp.ge.s32.totalorder %v32, 6
    %vm43 = vcmp.ge.s32.totalorder %v33, 6
    %v44 = vsel %vm42, 1, 0
    %v45 = vsel %vm43, 1, 0
    %v46 = vadd.s32 %v38, %v44
    %v47 = vadd.s32 %v39, %v45
    %vm48 = vcmp.ge.s32.totalorder %v35, 8
    %v49 = vsel %vm48, 1, 0
    %v50 = vadd.s32 %v41, %v49
    %v51 = vmul.u32 %v46, 3
    %v52 = vmul.u32 %v47, 3
    %v53 = vsub.s32 %v32, %v51
    %v54 = vsub.s32 %v33, %v52
    %v55 = vmul.u32 %v50, 4
    %v56 = vsub.s32 %v35, %v55
    %vm57 = vcmp.ne.s32.totalorder %v46, %v50
    %vm58 = vcmp.ne.s32.totalorder %v47, %v50
    %v59 = vsel %vm57, -1e+30, 0.0
    %v60 = vsel %vm58, -1e+30, 0.0
    %vm61 = vcmp.eq.s32.totalorder %v53, 0
    %vm62 = vcmp.eq.s32.totalorder %v54, 0
    %vm63 = vcmp.eq.s32.totalorder %v56, 0
    %vm64 = vmand %vm61, %vm63
    %vm65 = vmand %vm62, %vm63
    %s66 = sld [smem:[#allocation2]]
    %p67 = scmp.eq.f32.partialorder %s66, 1.0
    %s68 = scalar_select %p67, -1e+30, 0.0
    %v69 = vstv %s68
    %v70 = vsel %vm64, %v69, 0.0
    %v71 = vsel %vm65, %v69, 0.0
    %v72 = vadd.f32 %v59, %v70
    %v73 = vadd.f32 %v60, %v71
    %vm74 = vcmp.eq.s32.totalorder %v56, 1
    %vm75 = vmand %vm61, %vm74
    %vm76 = vmand %vm62, %vm74
    %s77 = sld [smem:[#allocation2 + $0x1]]
    %p78 = scmp.eq.f32.partialorder %s77, 1.0
    %s79 = scalar_select %p78, -1e+30, 0.0
    %v80 = vstv %s79
    %v81 = vsel %vm75, %v80, 0.0
    %v82 = vsel %vm76, %v80, 0.0
    %v83 = vadd.f32 %v72, %v81
    %v84 = vadd.f32 %v73, %v82
    %vm85 = vcmp.eq.s32.totalorder %v56, 2
    %vm86 = vmand %vm61, %vm85
    %vm87 = vmand %vm62, %vm85
    %s88 = sld [smem:[#allocation2 + $0x2]]
    %p89 = scmp.eq.f32.partialorder %s88, 1.0
    %s90 = scalar_select %p89, -1e+30, 0.0
    %v91 = vstv %s90
    %v92 = vsel %vm86, %v91, 0.0
    %v93 = vsel %vm87, %v91, 0.0
    %v94 = vadd.f32 %v83, %v92
    %v95 = vadd.f32 %v84, %v93
    %vm96 = vcmp.eq.s32.totalorder %v56, 3
    %vm97 = vmand %vm61, %vm96
    %vm98 = vmand %vm62, %vm96
    %s99 = sld [smem:[#allocation2 + $0x3]]
    %p100 = scmp.eq.f32.partialorder %s99, 1.0
    %s101 = scalar_select %p100, -1e+30, 0.0
    %v102 = vstv %s101
    %v103 = vsel %vm97, %v102, 0.0
    %v104 = vsel %vm98, %v102, 0.0
    %v105 = vadd.f32 %v94, %v103
    %v106 = vadd.f32 %v95, %v104
    %vm107 = vcmp.eq.s32.totalorder %v53, 1
    %vm108 = vcmp.eq.s32.totalorder %v54, 1
    %vm109 = vmand %vm107, %vm63
    %vm110 = vmand %vm108, %vm63
    %s111 = sld [smem:[#allocation2 + $0x80]]
    %p112 = scmp.eq.f32.partialorder %s111, 1.0
    %s113 = scalar_select %p112, -1e+30, 0.0
    %v114 = vstv %s113
    %v115 = vsel %vm109, %v114, 0.0
    %v116 = vsel %vm110, %v114, 0.0
    %v117 = vadd.f32 %v105, %v115
    %v118 = vadd.f32 %v106, %v116
    %vm119 = vmand %vm107, %vm74
    %vm120 = vmand %vm108, %vm74
    %s121 = sld [smem:[#allocation2 + $0x81]]
    %p122 = scmp.eq.f32.partialorder %s121, 1.0
    %s123 = scalar_select %p122, -1e+30, 0.0
    %v124 = vstv %s123
    %v125 = vsel %vm119, %v124, 0.0
    %v126 = vsel %vm120, %v124, 0.0
    %v127 = vadd.f32 %v117, %v125
    %v128 = vadd.f32 %v118, %v126
    %vm129 = vmand %vm107, %vm85
    %vm130 = vmand %vm108, %vm85
    %s131 = sld [smem:[#allocation2 + $0x82]]
    %p132 = scmp.eq.f32.partialorder %s131, 1.0
    %s133 = scalar_select %p132, -1e+30, 0.0
    %v134 = vstv %s133
    %v135 = vsel %vm129, %v134, 0.0
    %v136 = vsel %vm130, %v134, 0.0
    %v137 = vadd.f32 %v127, %v135
    %v138 = vadd.f32 %v128, %v136
    %vm139 = vmand %vm107, %vm96
    %vm140 = vmand %vm108, %vm96
    %s141 = sld [smem:[#allocation2 + $0x83]]
    %p142 = scmp.eq.f32.partialorder %s141, 1.0
    %s143 = scalar_select %p142, -1e+30, 0.0
    %v144 = vstv %s143
    %v145 = vsel %vm139, %v144, 0.0
    %v146 = vsel %vm140, %v144, 0.0
    %v147 = vadd.f32 %v137, %v145
    %v148 = vadd.f32 %v138, %v146
    %vm149 = vcmp.eq.s32.totalorder %v53, 2
    %vm150 = vcmp.eq.s32.totalorder %v54, 2
    %vm151 = vmand %vm149, %vm63
    %vm152 = vmand %vm150, %vm63
    %s153 = sld [smem:[#allocation2 + $0x100]]
    %p154 = scmp.eq.f32.partialorder %s153, 1.0
    %s155 = scalar_select %p154, -1e+30, 0.0
    %v156 = vstv %s155
    %v157 = vsel %vm151, %v156, 0.0
    %v158 = vsel %vm152, %v156, 0.0
    %v159 = vadd.f32 %v147, %v157
    %v160 = vadd.f32 %v148, %v158
    %vm161 = vmand %vm149, %vm74
    %vm162 = vmand %vm150, %vm74
    %s163 = sld [smem:[#allocation2 + $0x101]]
    %p164 = scmp.eq.f32.partialorder %s163, 1.0
    %s165 = scalar_select %p164, -1e+30, 0.0
    %v166 = vstv %s165
    %v167 = vsel %vm161, %v166, 0.0
    %v168 = vsel %vm162, %v166, 0.0
    %v169 = vadd.f32 %v159, %v167
    %v170 = vadd.f32 %v160, %v168
    %vm171 = vmand %vm149, %vm85
    %vm172 = vmand %vm150, %vm85
    %s173 = sld [smem:[#allocation2 + $0x102]]
    %p174 = scmp.eq.f32.partialorder %s173, 1.0
    %s175 = scalar_select %p174, -1e+30, 0.0
    %v176 = vstv %s175
    %v177 = vsel %vm171, %v176, 0.0
    %v178 = vsel %vm172, %v176, 0.0
    %v179 = vadd.f32 %v169, %v177
    %v180 = vadd.f32 %v170, %v178
    %vm181 = vmand %vm149, %vm96
    %vm182 = vmand %vm150, %vm96
    %s183 = sld [smem:[#allocation2 + $0x103]]
    %p184 = scmp.eq.f32.partialorder %s183, 1.0
    %s185 = scalar_select %p184, -1e+30, 0.0
    %v186 = vstv %s185
    %v187 = vsel %vm181, %v186, 0.0
    %v188 = vsel %vm182, %v186, 0.0
    %v189 = vadd.f32 %v179, %v187
    %v190 = vadd.f32 %v180, %v188
    %v191 = vld [vmem:[%s1] sm:$0xff]
    %v192 = vld [vmem:[%s1 + $0x8] sm:$0x1]
    %v193 = vmul.f32 %v191, 0.4472136
    %v194 = vmul.f32 %v192, 0.4472136
    %v195 = vld [vmem:[%s2] sm:$0xff]
    %v196 = vld [vmem:[%s2 + $0x8] sm:$0xf]
    %vm197 = vcmask 39936
    %v199 = vsel %vm197, %v193, 0
    %v202 = vsel %vm197, %v194, 0
    %v205 = vsel %vm197, %v195, 0
    %v208 = vsel %vm197, %v196, 0
    %210 = vmatprep.subr.mxu0 0.0
    %211 = vmatpush1.xpose.msra.mxu0 %v205
    %212 = vmatprep.subr.mxu0 0.0
    %213 = vmatpush1.xpose.msra.mxu0 %v208
    %214 = vmatprep.subr.mxu0 0.0
    %215 = vmatpush1.xpose.msra.mxu0 0.0
    %216 = vmatprep.subr.mxu0 0.0
    %217 = vmatpush1.xpose.msra.mxu0 0.0
    %218 = vmatprep.subr.mxu0 0.0
    %219 = vmatpush1.xpose.msra.mxu0 0.0
    %220 = vmatprep.subr.mxu0 0.0
    %221 = vmatpush1.xpose.msra.mxu0 0.0
    %222 = vmatprep.subr.mxu0 0.0
    %223 = vmatpush1.xpose.msra.mxu0 0.0
    %224 = vmatprep.subr.mxu0 0.0
    %225 = vmatpush1.xpose.msra.mxu0 0.0
    %226 = vmatprep.subr.mxu0 0.0
    %227 = vmatpush1.xpose.msra.mxu0 0.0
    %228 = vmatprep.subr.mxu0 0.0
    %229 = vmatpush1.xpose.msra.mxu0 0.0
    %230 = vmatprep.subr.mxu0 0.0
    %231 = vmatpush1.xpose.msra.mxu0 0.0
    %232 = vmatprep.subr.mxu0 0.0
    %233 = vmatpush1.xpose.msra.mxu0 0.0
    %234 = vmatprep.subr.mxu0 0.0
    %235 = vmatpush1.xpose.msra.mxu0 0.0
    %236 = vmatprep.subr.mxu0 0.0
    %237 = vmatpush1.xpose.msra.mxu0 0.0
    %238 = vmatprep.subr.mxu0 0.0
    %239 = vmatpush1.xpose.msra.mxu0 0.0
    %240 = vmatprep.subr.mxu0 0.0
    %241 = vmatpush1.xpose.msra.mxu0 0.0
    %242 = vmatprep.subr.mxu0 0.0
    %243 = vmatpush1.xpose.msra.mxu0 0.0
    %244 = vmatprep.subr.mxu0 0.0
    %245 = vmatpush1.xpose.msra.mxu0 0.0
    %246 = vmatprep.subr.mxu0 0.0
    %247 = vmatpush1.xpose.msra.mxu0 0.0
    %248 = vmatprep.subr.mxu0 0.0
    %249 = vmatpush1.xpose.msra.mxu0 0.0
    %250 = vmatprep.subr.mxu0 0.0
    %251 = vmatpush1.xpose.msra.mxu0 0.0
    %252 = vmatprep.subr.mxu0 0.0
    %253 = vmatpush1.xpose.msra.mxu0 0.0
    %254 = vmatprep.subr.mxu0 0.0
    %255 = vmatpush1.xpose.msra.mxu0 0.0
    %256 = vmatprep.subr.mxu0 0.0
    %257 = vmatpush1.xpose.msra.mxu0 0.0
    %258 = vmatprep.subr.mxu0 0.0
    %259 = vmatpush1.xpose.msra.mxu0 0.0
    %260 = vmatprep.subr.mxu0 0.0
    %261 = vmatpush1.xpose.msra.mxu0 0.0
    %262 = vmatprep.subr.mxu0 0.0
    %263 = vmatpush1.xpose.msra.mxu0 0.0
    %264 = vmatprep.subr.mxu0 0.0
    %265 = vmatpush1.xpose.msra.mxu0 0.0
    %266 = vmatprep.subr.mxu0 0.0
    %267 = vmatpush1.xpose.msra.mxu0 0.0
    %268 = vmatprep.subr.mxu0 0.0
    %269 = vmatpush1.xpose.msra.mxu0 0.0
    %270 = vmatprep.subr.mxu0 0.0
    %271 = vmatpush1.xpose.msra.mxu0 0.0
    %272 = vmatprep.subr.mxu0 0.0
    %273 = vmatpush1.xpose.msra.mxu0 0.0
    %274 = vmatprep.mubr.f32.mxu0 0.0
    %275 = vmatmul.mubr.f32.gmra.mrb[0].mxu0 %v199
    %v276 = vpop.f32.mrb[0].mxu0
    %v277 = vadd.f32 %v189, %v276
    %v278 = vpop.f32.mrb[0].mxu0
    %279 = vmatprep.mubr.f32.mxu0 0.0
    %280 = vmatmul.mubr.f32.gmra.mrb[0].mxu0 %v202
    %v281 = vpop.f32.mrb[0].mxu0
    %v282 = vadd.f32 %v190, %v281
    %v283 = vpop.f32.mrb[0].mxu0
    %284 = vdwg.mxu0
    %vm285 = vcmask 97280
    %v286 = vsel %vm285, %v277, -inf
    %287 = vmax.xlane.f32.xlu0 %v286
    %v288 = vpop.xlane.xlu0 %287
    %vm289 = vcmask 90112
    %v290 = vsel %vm289, %v282, -inf
    %291 = vmax.xlane.f32.xlu0 %v290
    %v292 = vpop.xlane.xlu0 %291
    %v293 = vsub.f32 %v277, %v288
    %v294 = vsub.f32 %v282, %v292
    %v295 = vmul.f32 %v293, 1.442695
    %v296 = vpow.pop %v295
    %v297 = vmul.f32 %v294, 1.442695
    %v298 = vpow.pop %v297
    %v299 = vsel %vm285, %v296, 0.0
    %300 = vadd.xlane.f32.xlu0 %v299
    %v301 = vpop.xlane.xlu0 %300
    %v302 = vsel %vm289, %v298, 0.0
    %303 = vadd.xlane.f32.xlu0 %v302
    %v304 = vpop.xlane.xlu0 %303
    %v305 = vrcp.pop %v301
    %v306 = vrcp.pop %v304
    %v307 = vmul.f32 %v296, %v305
    %v308 = vmul.f32 %v298, %v306
    %v309 = vld [vmem:[%s3] sm:$0xff]
    %v310 = vld [vmem:[%s3 + $0x8] sm:$0xf]
    %v312 = vsel %vm285, %v307, 0
    %v315 = vsel %vm285, %v308, 0
    %vm317 = vcmask 1043456
    %v319 = vsel %vm317, %v310, 0
    %321 = vmatprep.subr.mxu0 0.0
    %322 = vmatpush1.msra.mxu0 %v309
    %323 = vmatprep.subr.mxu0 0.0
    %324 = vmatpush1.msra.mxu0 %v319
    %325 = vmatprep.subr.mxu0 0.0
    %326 = vmatpush1.msra.mxu0 0.0
    %327 = vmatprep.subr.mxu0 0.0
    %328 = vmatpush1.msra.mxu0 0.0
    %329 = vmatprep.subr.mxu0 0.0
    %330 = vmatpush1.msra.mxu0 0.0
    %331 = vmatprep.subr.mxu0 0.0
    %332 = vmatpush1.msra.mxu0 0.0
    %333 = vmatprep.subr.mxu0 0.0
    %334 = vmatpush1.msra.mxu0 0.0
    %335 = vmatprep.subr.mxu0 0.0
    %336 = vmatpush1.msra.mxu0 0.0
    %337 = vmatprep.subr.mxu0 0.0
    %338 = vmatpush1.msra.mxu0 0.0
    %339 = vmatprep.subr.mxu0 0.0
    %340 = vmatpush1.msra.mxu0 0.0
    %341 = vmatprep.subr.mxu0 0.0
    %342 = vmatpush1.msra.mxu0 0.0
    %343 = vmatprep.subr.mxu0 0.0
    %344 = vmatpush1.msra.mxu0 0.0
    %345 = vmatprep.subr.mxu0 0.0
    %346 = vmatpush1.msra.mxu0 0.0
    %347 = vmatprep.subr.mxu0 0.0
    %348 = vmatpush1.msra.mxu0 0.0
    %349 = vmatprep.subr.mxu0 0.0
    %350 = vmatpush1.msra.mxu0 0.0
    %351 = vmatprep.subr.mxu0 0.0
    %352 = vmatpush1.msra.mxu0 0.0
    %353 = vmatprep.subr.mxu0 0.0
    %354 = vmatpush1.msra.mxu0 0.0
    %355 = vmatprep.subr.mxu0 0.0
    %356 = vmatpush1.msra.mxu0 0.0
    %357 = vmatprep.subr.mxu0 0.0
    %358 = vmatpush1.msra.mxu0 0.0
    %359 = vmatprep.subr.mxu0 0.0
    %360 = vmatpush1.msra.mxu0 0.0
    %361 = vmatprep.subr.mxu0 0.0
    %362 = vmatpush1.msra.mxu0 0.0
    %363 = vmatprep.subr.mxu0 0.0
    %364 = vmatpush1.msra.mxu0 0.0
    %365 = vmatprep.subr.mxu0 0.0
    %366 = vmatpush1.msra.mxu0 0.0
    %367 = vmatprep.subr.mxu0 0.0
    %368 = vmatpush1.msra.mxu0 0.0
    %369 = vmatprep.subr.mxu0 0.0
    %370 = vmatpush1.msra.mxu0 0.0
    %371 = vmatprep.subr.mxu0 0.0
    %372 = vmatpush1.msra.mxu0 0.0
    %373 = vmatprep.subr.mxu0 0.0
    %374 = vmatpush1.msra.mxu0 0.0
    %375 = vmatprep.subr.mxu0 0.0
    %376 = vmatpush1.msra.mxu0 0.0
    %377 = vmatprep.subr.mxu0 0.0
    %378 = vmatpush1.msra.mxu0 0.0
    %379 = vmatprep.subr.mxu0 0.0
    %380 = vmatpush1.msra.mxu0 0.0
    %381 = vmatprep.subr.mxu0 0.0
    %382 = vmatpush1.msra.mxu0 0.0
    %383 = vmatprep.subr.mxu0 0.0
    %384 = vmatpush1.msra.mxu0 0.0
    %385 = vmatprep.mubr.f32.mxu0 0.0
    %386 = vmatmul.mubr.f32.gmra.mrb[0].mxu0 %v312
    %v387 = vpop.f32.mrb[0].mxu0
    %v388 = vadd.f32 0.0, %v387
    %v389 = vpop.f32.mrb[0].mxu0
    %390 = vmatprep.mubr.f32.mxu0 0.0
    %391 = vmatmul.mubr.f32.gmra.mrb[0].mxu0 %v315
    %v392 = vpop.f32.mrb[0].mxu0
    %v393 = vadd.f32 0.0, %v392
    %v394 = vpop.f32.mrb[0].mxu0
    %395 = vdwg.mxu0
    %vm396 = vcmask 80896
    %397 = vst.msk [vmem:[#allocation5] sm:$0xff] %vm396, %v388
    %vm398 = vcmask 73728
    %399 = vst.msk [vmem:[#allocation5 + $0x8] sm:$0x1] %vm398, %v393
    // Predicated region
    $region22: #{tpu_custom_call.1} parent=1 // pred_check
      _
    $region23: #{tpu_custom_call.1} parent=1 // pred_check_branch
      %401 = sbr.rel (0) target = $region25
    $region24: #{tpu_custom_call.1} parent=1 // pred_region
      %s403 = ssub.s32 256, 256
      %404 = vsyncadd [#allocation3], %s403
      %s405 = sshll.u32 [#allocation5], 4
      %s406 = int_to_ptr.vmem [resolvable:$true] %s405
      %411 = dma.vmem_to_hbm [thread:$0]  %s406, 256, %s4, [#allocation3], 128, 128, 8
    $region25: #{tpu_custom_call.1} parent=1 // pred_fallthru
      _
    // Predicated region
    $region26: #{tpu_custom_call.1} parent=1 // pred_check
      _
    $region27: #{tpu_custom_call.1} parent=1 // pred_check_branch
      %413 = sbr.rel (0) target = $region29
    $region28: #{tpu_custom_call.1} parent=1 // pred_region
      %414 = dma.done [#allocation3], 256
    $region29: #{tpu_custom_call.1} parent=1 // pred_fallthru
      _
    %415 = vsyncpa [#allocation3], 1
    %416 = vsyncpa [#allocation4], 1

</llo_original>
